<compile_context>
chip_gen: v5e
topology: v5e:2x2
jax: 0.10.0
libtpu: 0.0.40
codegen_flags: <defaults>
</compile_context>

<pallas_src>
import functools

import jax
import jax.numpy as jnp
from jax import lax
from jax.experimental import pallas as pl

BN_EPS = 1e-5
LANE = 128  # lane-dense padded width for the fc1 output


def _round8(n):
    return (n + 7) // 8 * 8


# ----------------------------------------------------------------------------
# Fused kernel: both SAGEConv+BN+ReLU layers + pool/gather + fc1
# ----------------------------------------------------------------------------
def sage_fused_kernel(layers, g_off, n_final, hidden,
                      x_ref, adjg_ref, p_ref, fc_ref, o_ref):
    """Whole SAGE.forward in one kernel body.

    Static metadata (closed over):
      layers  : tuple of (adj_row_off, T, S, F, param_row_off) per layer
      g_off   : row offset of the fused pool+gather matrix G inside adjg_ref
      n_final : number of final target nodes N
      hidden  : hidden width H

    Refs (all whole-array VMEM blocks, no grid):
      x_ref    [S0, F0]          source features for layer 0
      adjg_ref [sum T_i + N, Smax]  per-layer degree-normalized adjacencies
                                  stacked on the sublane axis, followed by G
      p_ref    [sum(2F_i+3 pad8), H] per layer: [wl; wr] then rows bl/gamma/beta
      fc_ref   [pad8(2H+1), 128]  fc1 weight (rows 0..2H-1) and bias (row 2H),
                                  zero-padded to lane width 128
      o_ref    [2N, 128]          padded output (single unmasked store)
    """
    x = x_ref[...]
    for (a_off, t, s, f, p_off) in layers:
        a = adjg_ref[a_off:a_off + t, :s]                       # [T, S]
        aggr = jnp.dot(a, x, preferred_element_type=jnp.float32)  # [T, F]
        # Fused lin_l/lin_r: one MXU push instead of two.
        lhs = jnp.concatenate([aggr, x[:t]], axis=-1)           # [T, 2F]
        wlr = p_ref[p_off:p_off + 2 * f, :]                     # [2F, H]
        bl = p_ref[p_off + 2 * f:p_off + 2 * f + 1, :]          # [1, H]
        gamma = p_ref[p_off + 2 * f + 1:p_off + 2 * f + 2, :]   # [1, H]
        beta = p_ref[p_off + 2 * f + 2:p_off + 2 * f + 3, :]    # [1, H]
        h = jnp.dot(lhs, wlr, preferred_element_type=jnp.float32) + bl
        # BatchNorm1d training mode (batch mean, biased var), folded to one affine.
        inv_n = 1.0 / t
        mean = jnp.sum(h, axis=0, keepdims=True) * inv_n
        ex2 = jnp.sum(h * h, axis=0, keepdims=True) * inv_n
        var = ex2 - mean * mean
        scale = gamma * lax.rsqrt(var + BN_EPS)
        shift = beta - mean * scale
        x = jnp.maximum(h * scale + shift, 0.0)   # relu; dropout(p=0) = identity

    # x1 = cluster_features[ci.argmax(-1)] folded into one precomputed [N,N] matmul.
    g = adjg_ref[g_off:g_off + n_final, :n_final]               # [N, N]
    x1 = jnp.dot(g, x, preferred_element_type=jnp.float32)      # [N, H]

    # fc1(cat([cat([x,x1],1), cat([x1,x],1)],0)) as ONE matmul against padded wfc.
    lhs = jnp.concatenate(
        [jnp.concatenate([x, x1], axis=-1),
         jnp.concatenate([x1, x], axis=-1)], axis=0)            # [2N, 2H]
    w = fc_ref[:2 * hidden, :]                                  # [2H, 128]
    b = fc_ref[2 * hidden:2 * hidden + 1, :]                    # [1, 128]
    o_ref[...] = jnp.dot(lhs, w, preferred_element_type=jnp.float32) + b


# ----------------------------------------------------------------------------
# One-time constant preprocessing: pack everything into 4 operand slabs
# ----------------------------------------------------------------------------
def prepare_operands(adj_mats, layer_params, cluster_index, wfc, bfc):
    hidden = wfc.shape[0] // 2
    out_w = wfc.shape[1]
    n_final = adj_mats[-1].shape[0]

    # --- adjacency + fused pool/gather slab -------------------------------
    sizes = [(a.shape[0], a.shape[1]) for a in adj_mats]        # (T, S) per layer
    s_max = max(s for _, s in sizes)
    a_offs, rows = [], 0
    for t, _ in sizes:
        a_offs.append(rows)
        rows += _round8(t)
    g_off = rows
    rows += _round8(n_final)
    adjg = jnp.zeros((rows, s_max), jnp.float32)
    for (t, s), off, a in zip(sizes, a_offs, adj_mats):
        # mean aggregation: fold degree normalization into the adjacency once.
        a_norm = a / jnp.maximum(jnp.sum(a, axis=1, keepdims=True), 1.0)
        adjg = adjg.at[off:off + t, :s].set(a_norm)
    csum = jnp.sum(cluster_index, axis=0)                       # [C]
    inv_csum = jnp.where(csum > 0, 1.0 / csum, 0.0)             # empty-cluster guard
    cit = cluster_index.T * inv_csum[:, None]                   # [C, N]
    sel = jax.nn.one_hot(jnp.argmax(cluster_index, axis=-1),
                         cluster_index.shape[1], dtype=jnp.float32)   # [N, C]
    gmat = sel @ cit                                            # [N, N]
    adjg = adjg.at[g_off:g_off + n_final, :n_final].set(gmat)

    # --- per-layer parameter slab: [wl; wr; bl; gamma; beta] per layer ----
    p_offs, p_rows = [], 0
    for (wl, _, _, _, _) in layer_params:
        p_offs.append(p_rows)
        p_rows += _round8(2 * wl.shape[0] + 3)
    pslab = jnp.zeros((p_rows, hidden), jnp.float32)
    for off, (wl, bl, wr, gamma, beta) in zip(p_offs, layer_params):
        f = wl.shape[0]
        pslab = pslab.at[off:off + f].set(wl)
        pslab = pslab.at[off + f:off + 2 * f].set(wr)
        pslab = pslab.at[off + 2 * f].set(bl[0])
        pslab = pslab.at[off + 2 * f + 1].set(gamma[0])
        pslab = pslab.at[off + 2 * f + 2].set(beta[0])

    # --- fc1 slab: weight + bias row, zero-padded to lane width 128 -------
    fcslab = jnp.zeros((_round8(2 * hidden + 1), LANE), jnp.float32)
    fcslab = fcslab.at[:2 * hidden, :out_w].set(wfc)
    fcslab = fcslab.at[2 * hidden, :out_w].set(bfc[0])

    meta = dict(
        layers=tuple((a_offs[i], sizes[i][0], sizes[i][1],
                      layer_params[i][0].shape[0], p_offs[i])
                     for i in range(len(adj_mats))),
        g_off=g_off, n_final=n_final, hidden=hidden, out_w=out_w,
    )
    return (adjg, pslab, fcslab), meta


# ----------------------------------------------------------------------------
# Per-call path: exactly one pallas_call, returns the padded [2N, 128] output
# ----------------------------------------------------------------------------
def make_sage_forward(meta):
    kernel = functools.partial(sage_fused_kernel, meta["layers"], meta["g_off"],
                               meta["n_final"], meta["hidden"])
    n_final = meta["n_final"]

    @jax.jit
    def fwd(x0, adjg, pslab, fcslab):
        return pl.pallas_call(
            kernel,
            out_shape=jax.ShapeDtypeStruct((2 * n_final, LANE), jnp.float32),
            # No grid: single invocation, whole arrays resident in VMEM.
        )(x0, adjg, pslab, fcslab)

    return fwd


# ----------------------------------------------------------------------------
# Pure-JAX reference (mirrors the PyTorch math) for correctness checking
# ----------------------------------------------------------------------------
def sage_forward_ref(x, adj_mats, layer_params, ci, wfc, bfc):
    for a, (wl, bl, wr, gamma, beta) in zip(adj_mats, layer_params):
        t = a.shape[0]
        xt = x[:t]
        deg = jnp.maximum(a.sum(1, keepdims=True), 1.0)
        aggr = (a @ x) / deg
        h = aggr @ wl + bl + xt @ wr
        mean = h.mean(0, keepdims=True)
        var = ((h - mean) ** 2).mean(0, keepdims=True)
        h = (h - mean) / jnp.sqrt(var + BN_EPS) * gamma + beta
        x = jnp.maximum(h, 0.0)
    cf = (ci.T @ x) / ci.sum(0)[:, None]
    x1 = cf[jnp.argmax(ci, axis=-1)]
    xx = jnp.concatenate([jnp.concatenate([x, x1], 1),
                          jnp.concatenate([x1, x], 1)], 0)
    return xx @ wfc + bfc


# ----------------------------------------------------------------------------
# Main
# ----------------------------------------------------------------------------
if __name__ == "__main__":
    # Module config: in=16, hidden=32, out=8, num_layers=2, dropout=0.0, sigmoid=True
    in_ch, hid, out_ch = 16, 32, 8
    O = out_ch * 4

    key = jax.random.PRNGKey(0)
    ks = jax.random.split(key, 16)

    # Bipartite neighbor-sampler sizes per layer: (num_target, num_source)
    sizes = [(48, 32), (32, 16)]
    n_edges = [128, 64]

    # Node features for the source set of layer 0.
    x0 = jax.random.normal(ks[0], (sizes[0][0], in_ch), dtype=jnp.float32)

    # Deterministic edge lists -> dense adjacency (with edge multiplicities).
    adj_mats = []
    for li, ((S, T), E) in enumerate(zip(sizes, n_edges)):
        src = jax.random.randint(ks[1 + 2 * li], (E,), 0, S)
        dst = jax.random.randint(ks[2 + 2 * li], (E,), 0, T)
        a = jnp.zeros((T, S), jnp.float32).at[dst, src].add(1.0)
        adj_mats.append(a)

    # Per-layer parameters: SAGEConv (lin_l w/ bias, lin_r w/o bias) + BatchNorm1d.
    layer_params = []
    fan_ins = [in_ch, hid]
    for li, f_in in enumerate(fan_ins):
        scale = 1.0 / jnp.sqrt(jnp.float32(f_in))
        wl = jax.random.normal(ks[5 + 3 * li], (f_in, hid), jnp.float32) * scale
        wr = jax.random.normal(ks[6 + 3 * li], (f_in, hid), jnp.float32) * scale
        bl = jax.random.normal(ks[7 + 3 * li], (1, hid), jnp.float32) * 0.1
        gamma = jnp.ones((1, hid), jnp.float32)
        beta = jnp.zeros((1, hid), jnp.float32)
        layer_params.append((wl, bl, wr, gamma, beta))

    # fc1: Linear(hidden*2, out*4)
    wfc = jax.random.normal(ks[11], (2 * hid, O), jnp.float32) / jnp.sqrt(
        jnp.float32(2 * hid))
    bfc = jax.random.normal(ks[12], (1, O), jnp.float32) * 0.1

    # cluster_index: [N_final, C] hard assignment, each cluster non-empty.
    n_final, n_clusters = sizes[-1][1], 4
    assign = jax.random.permutation(ks[13], jnp.arange(n_final) % n_clusters)
    cluster_index = jax.nn.one_hot(assign, n_clusters, dtype=jnp.float32)

    # TODO(synk): F.dropout is omitted (dropout=0.0 in this config -> identity);
    # nonzero training-time dropout is inherently non-deterministic.

    # One-time constant packing (outside the per-call path).
    (adjg, pslab, fcslab), meta = prepare_operands(
        adj_mats, layer_params, cluster_index, wfc, bfc)
    sage_forward = make_sage_forward(meta)

    out_pad = sage_forward(x0, adjg, pslab, fcslab)
    out_pad = jax.block_until_ready(out_pad)
    out = out_pad[:, :meta["out_w"]]   # slice off lane padding (outside hot path)

    ref = sage_forward_ref(x0, adj_mats, layer_params, cluster_index, wfc, bfc)
    assert out.shape == (2 * n_final, O), out.shape
    assert jnp.allclose(out, ref, rtol=1e-4, atol=1e-4), float(
        jnp.max(jnp.abs(out - ref)))

    print("KERNEL_OK")
</pallas_src>

<mosaic_0001>
module attributes {stable_mosaic.version = 11 : i64} {
  func.func @sage_fused_kernel(%arg0: memref<48x16xf32, #tpu.memory_space<vmem>>, %arg1: memref<64x48xf32, #tpu.memory_space<vmem>>, %arg2: memref<112x32xf32, #tpu.memory_space<vmem>>, %arg3: memref<72x128xf32, #tpu.memory_space<vmem>>, %arg4: memref<32x128xf32, #tpu.memory_space<vmem>>) attributes {dimension_semantics = [], scalar_prefetch = 0 : i64, scratch_operands = 0 : i64, tpu.core_type = #tpu.core_type<tc>} {
    %c0 = arith.constant 0 : index
    %c0_0 = arith.constant 0 : index
    %0 = vector.load %arg0[%c0, %c0_0] : memref<48x16xf32, #tpu.memory_space<vmem>>, vector<48x16xf32>
    %c0_1 = arith.constant 0 : index
    %c0_2 = arith.constant 0 : index
    %1 = vector.load %arg1[%c0_1, %c0_2] : memref<64x48xf32, #tpu.memory_space<vmem>>, vector<32x48xf32>
    %cst = arith.constant dense<0.000000e+00> : vector<32x16xf32>
    %2 = tpu.matmul %1, %0, %cst {dimension_numbers = #tpu.dot_dimension_numbers<[1], [0], [0], [1], [0, 0, 1, 1], [], []>} : vector<32x48xf32>, vector<48x16xf32>, vector<32x16xf32> -> vector<32x16xf32>
    %3 = vector.extract_strided_slice %0 {offsets = [0, 0], sizes = [32, 16], strides = [1, 1]} : vector<48x16xf32> to vector<32x16xf32>
    %4 = tpu.concatenate %2, %3 in 1 : vector<32x16xf32>, vector<32x16xf32> -> vector<32x32xf32>
    %c0_3 = arith.constant 0 : index
    %c0_4 = arith.constant 0 : index
    %5 = vector.load %arg2[%c0_3, %c0_4] : memref<112x32xf32, #tpu.memory_space<vmem>>, vector<32x32xf32>
    %c32 = arith.constant 32 : index
    %c0_5 = arith.constant 0 : index
    %6 = vector.load %arg2[%c32, %c0_5] : memref<112x32xf32, #tpu.memory_space<vmem>>, vector<1x32xf32>
    %c33 = arith.constant 33 : index
    %c0_6 = arith.constant 0 : index
    %7 = vector.load %arg2[%c33, %c0_6] : memref<112x32xf32, #tpu.memory_space<vmem>>, vector<1x32xf32>
    %c34 = arith.constant 34 : index
    %c0_7 = arith.constant 0 : index
    %8 = vector.load %arg2[%c34, %c0_7] : memref<112x32xf32, #tpu.memory_space<vmem>>, vector<1x32xf32>
    %cst_8 = arith.constant dense<0.000000e+00> : vector<32x32xf32>
    %9 = tpu.matmul %4, %5, %cst_8 {dimension_numbers = #tpu.dot_dimension_numbers<[1], [0], [0], [1], [0, 0, 1, 1], [], []>} : vector<32x32xf32>, vector<32x32xf32>, vector<32x32xf32> -> vector<32x32xf32>
    %10 = vector.broadcast %6 : vector<1x32xf32> to vector<32x32xf32>
    %11 = arith.addf %9, %10 : vector<32x32xf32>
    %cst_9 = arith.constant dense<0.000000e+00> : vector<32xf32>
    %12 = vector.multi_reduction <add>, %11, %cst_9 [0] : vector<32x32xf32> to vector<32xf32>
    %13 = vector.shape_cast %12 : vector<32xf32> to vector<1x32xf32>
    %cst_10 = arith.constant 3.125000e-02 : f32
    %14 = vector.broadcast %cst_10 : f32 to vector<1x32xf32>
    %15 = arith.mulf %13, %14 : vector<1x32xf32>
    %16 = arith.mulf %11, %11 : vector<32x32xf32>
    %cst_11 = arith.constant dense<0.000000e+00> : vector<32xf32>
    %17 = vector.multi_reduction <add>, %16, %cst_11 [0] : vector<32x32xf32> to vector<32xf32>
    %18 = vector.shape_cast %17 : vector<32xf32> to vector<1x32xf32>
    %cst_12 = arith.constant 3.125000e-02 : f32
    %19 = vector.broadcast %cst_12 : f32 to vector<1x32xf32>
    %20 = arith.mulf %18, %19 : vector<1x32xf32>
    %21 = arith.mulf %15, %15 : vector<1x32xf32>
    %22 = arith.subf %20, %21 : vector<1x32xf32>
    %cst_13 = arith.constant 9.99999974E-6 : f32
    %23 = vector.broadcast %cst_13 : f32 to vector<1x32xf32>
    %24 = arith.addf %22, %23 : vector<1x32xf32>
    %25 = math.rsqrt %24 : vector<1x32xf32>
    %26 = arith.mulf %7, %25 : vector<1x32xf32>
    %27 = arith.mulf %15, %26 : vector<1x32xf32>
    %28 = arith.subf %8, %27 : vector<1x32xf32>
    %29 = vector.broadcast %26 : vector<1x32xf32> to vector<32x32xf32>
    %30 = arith.mulf %11, %29 : vector<32x32xf32>
    %31 = vector.broadcast %28 : vector<1x32xf32> to vector<32x32xf32>
    %32 = arith.addf %30, %31 : vector<32x32xf32>
    %cst_14 = arith.constant 0.000000e+00 : f32
    %33 = vector.broadcast %cst_14 : f32 to vector<32x32xf32>
    %34 = arith.maximumf %32, %33 : vector<32x32xf32>
    %c32_15 = arith.constant 32 : index
    %c0_16 = arith.constant 0 : index
    %35 = vector.load %arg1[%c32_15, %c0_16] : memref<64x48xf32, #tpu.memory_space<vmem>>, vector<16x32xf32>
    %cst_17 = arith.constant dense<0.000000e+00> : vector<16x32xf32>
    %36 = tpu.matmul %35, %34, %cst_17 {dimension_numbers = #tpu.dot_dimension_numbers<[1], [0], [0], [1], [0, 0, 1, 1], [], []>} : vector<16x32xf32>, vector<32x32xf32>, vector<16x32xf32> -> vector<16x32xf32>
    %37 = vector.extract_strided_slice %34 {offsets = [0, 0], sizes = [16, 32], strides = [1, 1]} : vector<32x32xf32> to vector<16x32xf32>
    %38 = tpu.concatenate %36, %37 in 1 : vector<16x32xf32>, vector<16x32xf32> -> vector<16x64xf32>
    %c40 = arith.constant 40 : index
    %c0_18 = arith.constant 0 : index
    %39 = vector.load %arg2[%c40, %c0_18] : memref<112x32xf32, #tpu.memory_space<vmem>>, vector<64x32xf32>
    %c104 = arith.constant 104 : index
    %c0_19 = arith.constant 0 : index
    %40 = vector.load %arg2[%c104, %c0_19] : memref<112x32xf32, #tpu.memory_space<vmem>>, vector<1x32xf32>
    %c105 = arith.constant 105 : index
    %c0_20 = arith.constant 0 : index
    %41 = vector.load %arg2[%c105, %c0_20] : memref<112x32xf32, #tpu.memory_space<vmem>>, vector<1x32xf32>
    %c106 = arith.constant 106 : index
    %c0_21 = arith.constant 0 : index
    %42 = vector.load %arg2[%c106, %c0_21] : memref<112x32xf32, #tpu.memory_space<vmem>>, vector<1x32xf32>
    %cst_22 = arith.constant dense<0.000000e+00> : vector<16x32xf32>
    %43 = tpu.matmul %38, %39, %cst_22 {dimension_numbers = #tpu.dot_dimension_numbers<[1], [0], [0], [1], [0, 0, 1, 1], [], []>} : vector<16x64xf32>, vector<64x32xf32>, vector<16x32xf32> -> vector<16x32xf32>
    %44 = vector.broadcast %40 : vector<1x32xf32> to vector<16x32xf32>
    %45 = arith.addf %43, %44 : vector<16x32xf32>
    %cst_23 = arith.constant dense<0.000000e+00> : vector<32xf32>
    %46 = vector.multi_reduction <add>, %45, %cst_23 [0] : vector<16x32xf32> to vector<32xf32>
    %47 = vector.shape_cast %46 : vector<32xf32> to vector<1x32xf32>
    %cst_24 = arith.constant 6.250000e-02 : f32
    %48 = vector.broadcast %cst_24 : f32 to vector<1x32xf32>
    %49 = arith.mulf %47, %48 : vector<1x32xf32>
    %50 = arith.mulf %45, %45 : vector<16x32xf32>
    %cst_25 = arith.constant dense<0.000000e+00> : vector<32xf32>
    %51 = vector.multi_reduction <add>, %50, %cst_25 [0] : vector<16x32xf32> to vector<32xf32>
    %52 = vector.shape_cast %51 : vector<32xf32> to vector<1x32xf32>
    %cst_26 = arith.constant 6.250000e-02 : f32
    %53 = vector.broadcast %cst_26 : f32 to vector<1x32xf32>
    %54 = arith.mulf %52, %53 : vector<1x32xf32>
    %55 = arith.mulf %49, %49 : vector<1x32xf32>
    %56 = arith.subf %54, %55 : vector<1x32xf32>
    %cst_27 = arith.constant 9.99999974E-6 : f32
    %57 = vector.broadcast %cst_27 : f32 to vector<1x32xf32>
    %58 = arith.addf %56, %57 : vector<1x32xf32>
    %59 = math.rsqrt %58 : vector<1x32xf32>
    %60 = arith.mulf %41, %59 : vector<1x32xf32>
    %61 = arith.mulf %49, %60 : vector<1x32xf32>
    %62 = arith.subf %42, %61 : vector<1x32xf32>
    %63 = vector.broadcast %60 : vector<1x32xf32> to vector<16x32xf32>
    %64 = arith.mulf %45, %63 : vector<16x32xf32>
    %65 = vector.broadcast %62 : vector<1x32xf32> to vector<16x32xf32>
    %66 = arith.addf %64, %65 : vector<16x32xf32>
    %cst_28 = arith.constant 0.000000e+00 : f32
    %67 = vector.broadcast %cst_28 : f32 to vector<16x32xf32>
    %68 = arith.maximumf %66, %67 : vector<16x32xf32>
    %c48 = arith.constant 48 : index
    %c0_29 = arith.constant 0 : index
    %69 = vector.load %arg1[%c48, %c0_29] : memref<64x48xf32, #tpu.memory_space<vmem>>, vector<16x16xf32>
    %cst_30 = arith.constant dense<0.000000e+00> : vector<16x32xf32>
    %70 = tpu.matmul %69, %68, %cst_30 {dimension_numbers = #tpu.dot_dimension_numbers<[1], [0], [0], [1], [0, 0, 1, 1], [], []>} : vector<16x16xf32>, vector<16x32xf32>, vector<16x32xf32> -> vector<16x32xf32>
    %71 = tpu.concatenate %68, %70 in 1 : vector<16x32xf32>, vector<16x32xf32> -> vector<16x64xf32>
    %72 = tpu.concatenate %70, %68 in 1 : vector<16x32xf32>, vector<16x32xf32> -> vector<16x64xf32>
    %73 = tpu.concatenate %71, %72 in 0 : vector<16x64xf32>, vector<16x64xf32> -> vector<32x64xf32>
    %c0_31 = arith.constant 0 : index
    %c0_32 = arith.constant 0 : index
    %74 = vector.load %arg3[%c0_31, %c0_32] : memref<72x128xf32, #tpu.memory_space<vmem>>, vector<64x128xf32>
    %c64 = arith.constant 64 : index
    %c0_33 = arith.constant 0 : index
    %75 = vector.load %arg3[%c64, %c0_33] : memref<72x128xf32, #tpu.memory_space<vmem>>, vector<1x128xf32>
    %cst_34 = arith.constant dense<0.000000e+00> : vector<32x128xf32>
    %76 = tpu.matmul %73, %74, %cst_34 {dimension_numbers = #tpu.dot_dimension_numbers<[1], [0], [0], [1], [0, 0, 1, 1], [], []>} : vector<32x64xf32>, vector<64x128xf32>, vector<32x128xf32> -> vector<32x128xf32>
    %77 = vector.broadcast %75 : vector<1x128xf32> to vector<32x128xf32>
    %78 = arith.addf %76, %77 : vector<32x128xf32>
    %c0_35 = arith.constant 0 : index
    %c0_36 = arith.constant 0 : index
    %79 = vector.load %arg4[%c0_35, %c0_36] : memref<32x128xf32, #tpu.memory_space<vmem>>, vector<32x128xf32>
    tpu.vector_store %arg4[%c0_35, %c0_36], %78 {strides = array<i32>} : memref<32x128xf32, #tpu.memory_space<vmem>>, vector<32x128xf32>,
    return
  }
}

</mosaic_0001>

<llo_original>
// kernel: fwd.1
$region0: #{fwd.1}
  #allocation0 [shape = 'u32[]', space=smem, size = 0x4, offset = 0x4, fixed_abs, tag = 'smem constant byte address 0x4 - core index']
  #allocation1 [shape = 'u32[72,128]{1,0:T(1,128)}', space=vmem, size = 0x9000, scoped, tag = 'internal scratch']
  %s0 = inlined_call_operand.vmem [shape: f32[48,16], index: 0, kind: input, shape index: {}]
  %s1 = inlined_call_operand.vmem [shape: f32[64,48], index: 1, kind: input, shape index: {}]
  %s2 = inlined_call_operand.vmem [shape: f32[112,32], index: 2, kind: input, shape index: {}]
  %s3 = inlined_call_operand.vmem [shape: f32[72,128], index: 3, kind: input, shape index: {}]
  %s4 = inlined_call_operand.hbm [shape: f32[32,128], index: 4, kind: output, shape index: {}]
  %s5 = sld [smem:[#allocation0]]
  $region26: #{fwd.1} parent=0
    _
  %s7 = ssub.s32 1, %s5
  %s8 = scalar_select 0, %s7, %s5
  $region1: #{fwd.1} parent=0
    #allocation2 [shape = 'u8[16384]{0}', space=vmem, size = 0x4000, scoped, tag = 'output window, operand 0, single buffered']
    #allocation3 [shape = 's32[1]{0}', space=sflag, size = 0x4, scoped, tag = 'scoped memory for fwd.1']
    %9 = vsyncpa [#allocation3], 0
    // Predicated region
    $region2: #{fwd.1} parent=1 // pred_check
      _
    $region3: #{fwd.1} parent=1 // pred_check_branch
      %11 = sbr.rel (0) target = $region5
    $region4: #{fwd.1} parent=1 // pred_region
      _
    $region5: #{fwd.1} parent=1 // pred_fallthru
      _
    // Predicated region
    $region6: #{fwd.1} parent=1 // pred_check
      _
    $region7: #{fwd.1} parent=1 // pred_check_branch
      %13 = sbr.rel (0) target = $region9
    $region8: #{fwd.1} parent=1 // pred_region
      _
    $region9: #{fwd.1} parent=1 // pred_fallthru
      _
    // Predicated region
    $region10: #{fwd.1} parent=1 // pred_check
      _
    $region11: #{fwd.1} parent=1 // pred_check_branch
      %15 = sbr.rel (0) target = $region13
    $region12: #{fwd.1} parent=1 // pred_region
      _
    $region13: #{fwd.1} parent=1 // pred_fallthru
      _
    // Predicated region
    $region14: #{fwd.1} parent=1 // pred_check
      _
    $region15: #{fwd.1} parent=1 // pred_check_branch
      %17 = sbr.rel (0) target = $region17
    $region16: #{fwd.1} parent=1 // pred_region
      _
    $region17: #{fwd.1} parent=1 // pred_fallthru
      _
    %v18 = vld [vmem:[%s0] sm:$0xff]
    %v19 = vld [vmem:[%s0 + $0x8] sm:$0xff]
    %v20 = vld [vmem:[%s0 + $0x10] sm:$0xff]
    %v21 = vld [vmem:[%s0 + $0x18] sm:$0xff]
    %v22 = vld [vmem:[%s0 + $0x20] sm:$0xff]
    %v23 = vld [vmem:[%s0 + $0x28] sm:$0xff]
    %v24 = vld [vmem:[%s1] sm:$0xff]
    %v25 = vld [vmem:[%s1 + $0x8] sm:$0xff]
    %v26 = vld [vmem:[%s1 + $0x10] sm:$0xff]
    %v27 = vld [vmem:[%s1 + $0x18] sm:$0xff]
    %vm28 = vcmask 392192
    %v30 = vsel %vm28, %v24, 0
    %v33 = vsel %vm28, %v25, 0
    %v36 = vsel %vm28, %v26, 0
    %v39 = vsel %vm28, %v27, 0
    %41 = vmatpush.msra.mxu0 0.0
    %42 = vmatpush.msra.mxu0 0.0
    %43 = vmatpush.msra.mxu0 0.0
    %44 = vmatpush.msra.mxu0 0.0
    %45 = vmatpush.msra.mxu0 0.0
    %46 = vmatpush.msra.mxu0 0.0
    %47 = vmatpush.msra.mxu0 0.0
    %48 = vmatpush.msra.mxu0 0.0
    %49 = vmatpush.msra.mxu0 0.0
    %50 = vmatpush.msra.mxu0 0.0
    %51 = vmatpush.msra.mxu0 %v23
    %52 = vmatpush.msra.mxu0 %v22
    %53 = vmatpush.msra.mxu0 %v21
    %54 = vmatpush.msra.mxu0 %v20
    %55 = vmatpush.msra.mxu0 %v19
    %56 = vmatpush.msra.mxu0 %v18
    %57 = vmatmul.f32.gmra.mxu0 %v30
    %v58 = vpop.f32.mrf.mxu0
    %v59 = vadd.f32 0.0, %v58
    %60 = vmatmul.f32.gmra.mxu0 %v33
    %v61 = vpop.f32.mrf.mxu0
    %v62 = vadd.f32 0.0, %v61
    %63 = vmatmul.f32.gmra.mxu0 %v36
    %v64 = vpop.f32.mrf.mxu0
    %v65 = vadd.f32 0.0, %v64
    %66 = vmatmul.f32.gmra.mxu0 %v39
    %v67 = vpop.f32.mrf.mxu0
    %v68 = vadd.f32 0.0, %v67
    %69 = vdwg.mxu0
    %74 = vrot.lane.b32.xlu0 %v18, 16
    %v75 = vpop.permute.xlu0 %74
    %76 = vrot.lane.b32.xlu0 %v19, 16
    %v77 = vpop.permute.xlu0 %76
    %78 = vrot.lane.b32.xlu0 %v20, 16
    %v79 = vpop.permute.xlu0 %78
    %80 = vrot.lane.b32.xlu0 %v21, 16
    %v81 = vpop.permute.xlu0 %80
    %vm86 = vcmask 130048
    %v87 = vsel %vm86, %v59, %v75
    %v88 = vsel %vm86, %v62, %v77
    %v89 = vsel %vm86, %v65, %v79
    %v90 = vsel %vm86, %v68, %v81
    %v91 = vld [vmem:[%s2] sm:$0xff]
    %v92 = vld [vmem:[%s2 + $0x8] sm:$0xff]
    %v93 = vld [vmem:[%s2 + $0x10] sm:$0xff]
    %v94 = vld [vmem:[%s2 + $0x18] sm:$0xff]
    %v95 = vld [vmem:[%s2 + $0x20] sm:$0x1]
    %v96 = vld [vmem:[%s2 + $0x21] sm:$0x1]
    %v97 = vld [vmem:[%s2 + $0x22] sm:$0x1]
    %v98 = vperm.slane %v95, 0
    %vm99 = vcmask 261120
    %v101 = vsel %vm99, %v87, 0
    %v104 = vsel %vm99, %v88, 0
    %v107 = vsel %vm99, %v89, 0
    %v110 = vsel %vm99, %v90, 0
    %112 = vmatpush.msra.mxu0 0.0
    %113 = vmatpush.msra.mxu0 0.0
    %114 = vmatpush.msra.mxu0 0.0
    %115 = vmatpush.msra.mxu0 0.0
    %116 = vmatpush.msra.mxu0 0.0
    %117 = vmatpush.msra.mxu0 0.0
    %118 = vmatpush.msra.mxu0 0.0
    %119 = vmatpush.msra.mxu0 0.0
    %120 = vmatpush.msra.mxu0 0.0
    %121 = vmatpush.msra.mxu0 0.0
    %122 = vmatpush.msra.mxu0 0.0
    %123 = vmatpush.msra.mxu0 0.0
    %124 = vmatpush.msra.mxu0 %v94
    %125 = vmatpush.msra.mxu0 %v93
    %126 = vmatpush.msra.mxu0 %v92
    %127 = vmatpush.msra.mxu0 %v91
    %128 = vmatmul.f32.gmra.mxu0 %v101
    %v129 = vpop.f32.mrf.mxu0
    %v130 = vadd.f32 %v98, %v129
    %131 = vmatmul.f32.gmra.mxu0 %v104
    %v132 = vpop.f32.mrf.mxu0
    %v133 = vadd.f32 %v98, %v132
    %134 = vmatmul.f32.gmra.mxu0 %v107
    %v135 = vpop.f32.mrf.mxu0
    %v136 = vadd.f32 %v98, %v135
    %137 = vmatmul.f32.gmra.mxu0 %v110
    %v138 = vpop.f32.mrf.mxu0
    %v139 = vadd.f32 %v98, %v138
    %140 = vdwg.mxu0
    %v141 = vsel %vm99, %v130, 0.0
    %v142 = vsel %vm99, %v133, 0.0
    %v143 = vadd.f32 %v141, %v142
    %v144 = vsel %vm99, %v136, 0.0
    %v145 = vadd.f32 %v143, %v144
    %v146 = vsel %vm99, %v139, 0.0
    %v147 = vadd.f32 %v145, %v146
    %v148 = vrot.slane %v147, 4
    %v149 = vadd.f32 %v147, %v148
    %v150 = vrot.slane %v149, 2
    %v151 = vadd.f32 %v149, %v150
    %v152 = vrot.slane %v151, 1
    %v153 = vadd.f32 %v151, %v152
    %v154 = vmul.f32 %v153, 0.03125
    %v155 = vmul.f32 %v130, %v130
    %v156 = vmul.f32 %v133, %v133
    %v157 = vmul.f32 %v136, %v136
    %v158 = vmul.f32 %v139, %v139
    %v159 = vsel %vm99, %v155, 0.0
    %v160 = vsel %vm99, %v156, 0.0
    %v161 = vadd.f32 %v159, %v160
    %v162 = vsel %vm99, %v157, 0.0
    %v163 = vadd.f32 %v161, %v162
    %v164 = vsel %vm99, %v158, 0.0
    %v165 = vadd.f32 %v163, %v164
    %v166 = vrot.slane %v165, 4
    %v167 = vadd.f32 %v165, %v166
    %v168 = vrot.slane %v167, 2
    %v169 = vadd.f32 %v167, %v168
    %v170 = vrot.slane %v169, 1
    %v171 = vadd.f32 %v169, %v170
    %v172 = vmul.f32 %v171, 0.03125
    %v173 = vmul.f32 %v154, %v154
    %v174 = vsub.f32 %v172, %v173
    %v175 = vadd.f32 %v174, 1e-05
    %v176 = vrsqrt.pop %v175
    %v177 = vmul.f32 %v176, %v175
    %v178 = vmul.f32 %v177, %v176
    %v179 = vmul.f32 0.5, %v178
    %v180 = vsub.f32 1.5, %v179
    %v181 = vmul.f32 %v176, %v180
    %vm182 = vweird.f32 %v175
    %vm183 = vweird.f32 %v176
    %vm184 = vmor %vm182, %vm183
    %v185 = vsel %vm184, %v176, %v181
    %v186 = vmul.f32 %v96, %v185
    %v187 = vmul.f32 %v154, %v186
    %v188 = vsub.f32 %v97, %v187
    %v189 = vperm.slane %v186, 0
    %v190 = vmul.f32 %v130, %v189
    %v191 = vmul.f32 %v133, %v189
    %v192 = vmul.f32 %v136, %v189
    %v193 = vmul.f32 %v139, %v189
    %v194 = vperm.slane %v188, 0
    %v195 = vadd.f32 %v190, %v194
    %v196 = vadd.f32 %v191, %v194
    %v197 = vadd.f32 %v192, %v194
    %v198 = vadd.f32 %v193, %v194
    %v199 = vmax.f32 %v195, 0.0
    %v200 = vmax.f32 %v196, 0.0
    %v201 = vmax.f32 %v197, 0.0
    %v202 = vmax.f32 %v198, 0.0
    %v203 = vld [vmem:[%s1 + $0x20] sm:$0xff]
    %v204 = vld [vmem:[%s1 + $0x28] sm:$0xff]
    %v206 = vsel %vm99, %v203, 0
    %v209 = vsel %vm99, %v204, 0
    %211 = vmatpush.msra.mxu0 0.0
    %212 = vmatpush.msra.mxu0 0.0
    %213 = vmatpush.msra.mxu0 0.0
    %214 = vmatpush.msra.mxu0 0.0
    %215 = vmatpush.msra.mxu0 0.0
    %216 = vmatpush.msra.mxu0 0.0
    %217 = vmatpush.msra.mxu0 0.0
    %218 = vmatpush.msra.mxu0 0.0
    %219 = vmatpush.msra.mxu0 0.0
    %220 = vmatpush.msra.mxu0 0.0
    %221 = vmatpush.msra.mxu0 0.0
    %222 = vmatpush.msra.mxu0 0.0
    %223 = vmatpush.msra.mxu0 %v202
    %224 = vmatpush.msra.mxu0 %v201
    %225 = vmatpush.msra.mxu0 %v200
    %226 = vmatpush.msra.mxu0 %v199
    %227 = vmatmul.f32.gmra.mxu0 %v206
    %v228 = vpop.f32.mrf.mxu0
    %v229 = vadd.f32 0.0, %v228
    %230 = vmatmul.f32.gmra.mxu0 %v209
    %v231 = vpop.f32.mrf.mxu0
    %v232 = vadd.f32 0.0, %v231
    %233 = vdwg.mxu0
    %236 = vrot.lane.b32.xlu0 %v199, 32
    %v237 = vpop.permute.xlu0 %236
    %238 = vrot.lane.b32.xlu0 %v200, 32
    %v239 = vpop.permute.xlu0 %238
    %v242 = vsel %vm99, %v229, %v237
    %v243 = vsel %vm99, %v232, %v239
    %v244 = vld [vmem:[%s2 + $0x28] sm:$0xff]
    %v245 = vld [vmem:[%s2 + $0x30] sm:$0xff]
    %v246 = vld [vmem:[%s2 + $0x38] sm:$0xff]
    %v247 = vld [vmem:[%s2 + $0x40] sm:$0xff]
    %v248 = vld [vmem:[%s2 + $0x48] sm:$0xff]
    %v249 = vld [vmem:[%s2 + $0x50] sm:$0xff]
    %v250 = vld [vmem:[%s2 + $0x58] sm:$0xff]
    %v251 = vld [vmem:[%s2 + $0x60] sm:$0xff]
    %v252 = vld [vmem:[%s2 + $0x68] sm:$0x1]
    %v253 = vld [vmem:[%s2 + $0x69] sm:$0x1]
    %v254 = vld [vmem:[%s2 + $0x6a] sm:$0x1]
    %v255 = vperm.slane %v252, 0
    %vm256 = vcmask 523264
    %v258 = vsel %vm256, %v242, 0
    %v261 = vsel %vm256, %v243, 0
    %263 = vmatpush.msra.mxu0 0.0
    %264 = vmatpush.msra.mxu0 0.0
    %265 = vmatpush.msra.mxu0 0.0
    %266 = vmatpush.msra.mxu0 0.0
    %267 = vmatpush.msra.mxu0 0.0
    %268 = vmatpush.msra.mxu0 0.0
    %269 = vmatpush.msra.mxu0 0.0
    %270 = vmatpush.msra.mxu0 0.0
    %271 = vmatpush.msra.mxu0 %v251
    %272 = vmatpush.msra.mxu0 %v250
    %273 = vmatpush.msra.mxu0 %v249
    %274 = vmatpush.msra.mxu0 %v248
    %275 = vmatpush.msra.mxu0 %v247
    %276 = vmatpush.msra.mxu0 %v246
    %277 = vmatpush.msra.mxu0 %v245
    %278 = vmatpush.msra.mxu0 %v244
    %279 = vmatmul.f32.gmra.mxu0 %v258
    %v280 = vpop.f32.mrf.mxu0
    %v281 = vadd.f32 %v255, %v280
    %282 = vmatmul.f32.gmra.mxu0 %v261
    %v283 = vpop.f32.mrf.mxu0
    %v284 = vadd.f32 %v255, %v283
    %285 = vdwg.mxu0
    %v286 = vsel %vm99, %v281, 0.0
    %v287 = vsel %vm99, %v284, 0.0
    %v288 = vadd.f32 %v286, %v287
    %v289 = vrot.slane %v288, 4
    %v290 = vadd.f32 %v288, %v289
    %v291 = vrot.slane %v290, 2
    %v292 = vadd.f32 %v290, %v291
    %v293 = vrot.slane %v292, 1
    %v294 = vadd.f32 %v292, %v293
    %v295 = vmul.f32 %v294, 0.0625
    %v296 = vmul.f32 %v281, %v281
    %v297 = vmul.f32 %v284, %v284
    %v298 = vsel %vm99, %v296, 0.0
    %v299 = vsel %vm99, %v297, 0.0
    %v300 = vadd.f32 %v298, %v299
    %v301 = vrot.slane %v300, 4
    %v302 = vadd.f32 %v300, %v301
    %v303 = vrot.slane %v302, 2
    %v304 = vadd.f32 %v302, %v303
    %v305 = vrot.slane %v304, 1
    %v306 = vadd.f32 %v304, %v305
    %v307 = vmul.f32 %v306, 0.0625
    %v308 = vmul.f32 %v295, %v295
    %v309 = vsub.f32 %v307, %v308
    %v310 = vadd.f32 %v309, 1e-05
    %v311 = vrsqrt.pop %v310
    %v312 = vmul.f32 %v311, %v310
    %v313 = vmul.f32 %v312, %v311
    %v314 = vmul.f32 0.5, %v313
    %v315 = vsub.f32 1.5, %v314
    %v316 = vmul.f32 %v311, %v315
    %vm317 = vweird.f32 %v310
    %vm318 = vweird.f32 %v311
    %vm319 = vmor %vm317, %vm318
    %v320 = vsel %vm319, %v311, %v316
    %v321 = vmul.f32 %v253, %v320
    %v322 = vmul.f32 %v295, %v321
    %v323 = vsub.f32 %v254, %v322
    %v324 = vperm.slane %v321, 0
    %v325 = vmul.f32 %v281, %v324
    %v326 = vmul.f32 %v284, %v324
    %v327 = vperm.slane %v323, 0
    %v328 = vadd.f32 %v325, %v327
    %v329 = vadd.f32 %v326, %v327
    %v330 = vmax.f32 %v328, 0.0
    %v331 = vmax.f32 %v329, 0.0
    %v332 = vld [vmem:[%s1 + $0x30] sm:$0xff]
    %v333 = vld [vmem:[%s1 + $0x38] sm:$0xff]
    %v335 = vsel %vm86, %v332, 0
    %v338 = vsel %vm86, %v333, 0
    %340 = vmatpush.msra.mxu0 0.0
    %341 = vmatpush.msra.mxu0 0.0
    %342 = vmatpush.msra.mxu0 0.0
    %343 = vmatpush.msra.mxu0 0.0
    %344 = vmatpush.msra.mxu0 0.0
    %345 = vmatpush.msra.mxu0 0.0
    %346 = vmatpush.msra.mxu0 0.0
    %347 = vmatpush.msra.mxu0 0.0
    %348 = vmatpush.msra.mxu0 0.0
    %349 = vmatpush.msra.mxu0 0.0
    %350 = vmatpush.msra.mxu0 0.0
    %351 = vmatpush.msra.mxu0 0.0
    %352 = vmatpush.msra.mxu0 0.0
    %353 = vmatpush.msra.mxu0 0.0
    %354 = vmatpush.msra.mxu0 %v331
    %355 = vmatpush.msra.mxu0 %v330
    %356 = vmatmul.f32.gmra.mxu0 %v335
    %v357 = vpop.f32.mrf.mxu0
    %v358 = vadd.f32 0.0, %v357
    %359 = vmatmul.f32.gmra.mxu0 %v338
    %v360 = vpop.f32.mrf.mxu0
    %v361 = vadd.f32 0.0, %v360
    %362 = vdwg.mxu0
    %365 = vrot.lane.b32.xlu0 %v358, 32
    %v366 = vpop.permute.xlu0 %365
    %367 = vrot.lane.b32.xlu0 %v361, 32
    %v368 = vpop.permute.xlu0 %367
    %v371 = vsel %vm99, %v330, %v366
    %v372 = vsel %vm99, %v331, %v368
    %375 = vrot.lane.b32.xlu0 %v330, 32
    %v376 = vpop.permute.xlu0 %375
    %377 = vrot.lane.b32.xlu0 %v331, 32
    %v378 = vpop.permute.xlu0 %377
    %v381 = vsel %vm99, %v358, %v376
    %v382 = vsel %vm99, %v361, %v378
    %v383 = vld [vmem:[%s3] sm:$0xff]
    %v384 = vld [vmem:[%s3 + $0x8] sm:$0xff]
    %v385 = vld [vmem:[%s3 + $0x10] sm:$0xff]
    %v386 = vld [vmem:[%s3 + $0x18] sm:$0xff]
    %v387 = vld [vmem:[%s3 + $0x20] sm:$0xff]
    %v388 = vld [vmem:[%s3 + $0x28] sm:$0xff]
    %v389 = vld [vmem:[%s3 + $0x30] sm:$0xff]
    %v390 = vld [vmem:[%s3 + $0x38] sm:$0xff]
    %v391 = vld [vmem:[%s3 + $0x40] sm:$0x1]
    %v392 = vperm.slane %v391, 0
    %v394 = vsel %vm256, %v371, 0
    %v397 = vsel %vm256, %v372, 0
    %v400 = vsel %vm256, %v381, 0
    %v403 = vsel %vm256, %v382, 0
    %405 = vmatpush.msra.mxu0 0.0
    %406 = vmatpush.msra.mxu0 0.0
    %407 = vmatpush.msra.mxu0 0.0
    %408 = vmatpush.msra.mxu0 0.0
    %409 = vmatpush.msra.mxu0 0.0
    %410 = vmatpush.msra.mxu0 0.0
    %411 = vmatpush.msra.mxu0 0.0
    %412 = vmatpush.msra.mxu0 0.0
    %413 = vmatpush.msra.mxu0 %v390
    %414 = vmatpush.msra.mxu0 %v389
    %415 = vmatpush.msra.mxu0 %v388
    %416 = vmatpush.msra.mxu0 %v387
    %417 = vmatpush.msra.mxu0 %v386
    %418 = vmatpush.msra.mxu0 %v385
    %419 = vmatpush.msra.mxu0 %v384
    %420 = vmatpush.msra.mxu0 %v383
    %421 = vmatmul.f32.gmra.mxu0 %v394
    %v422 = vpop.f32.mrf.mxu0
    %v423 = vadd.f32 %v392, %v422
    %424 = vmatmul.f32.gmra.mxu0 %v397
    %v425 = vpop.f32.mrf.mxu0
    %v426 = vadd.f32 %v392, %v425
    %427 = vmatmul.f32.gmra.mxu0 %v400
    %v428 = vpop.f32.mrf.mxu0
    %v429 = vadd.f32 %v392, %v428
    %430 = vmatmul.f32.gmra.mxu0 %v403
    %v431 = vpop.f32.mrf.mxu0
    %v432 = vadd.f32 %v392, %v431
    %433 = vdwg.mxu0
    %434 = vst [vmem:[#allocation2] sm:$0xff] %v423
    %435 = vst [vmem:[#allocation2 + $0x8] sm:$0xff] %v426
    %436 = vst [vmem:[#allocation2 + $0x10] sm:$0xff] %v429
    %437 = vst [vmem:[#allocation2 + $0x18] sm:$0xff] %v432
    // Predicated region
    $region18: #{fwd.1} parent=1 // pred_check
      _
    $region19: #{fwd.1} parent=1 // pred_check_branch
      %439 = sbr.rel (0) target = $region21
    $region20: #{fwd.1} parent=1 // pred_region
      %441 = vsyncadd [#allocation3], 0
      %s442 = sshll.u32 [#allocation2], 4
      %s443 = int_to_ptr.vmem [resolvable:$true] %s442
      %s444 = sshll.u32 %s4, 4
      %s445 = int_to_ptr.hbm [resolvable:$true] %s444
      %450 = dma.vmem_to_hbm [thread:$0]  %s443, 512, %s445, [#allocation3], 128, 128, 8
    $region21: #{fwd.1} parent=1 // pred_fallthru
      _
    // Predicated region
    $region22: #{fwd.1} parent=1 // pred_check
      _
    $region23: #{fwd.1} parent=1 // pred_check_branch
      %452 = sbr.rel (0) target = $region25
    $region24: #{fwd.1} parent=1 // pred_region
      %454 = dma.done [#allocation3], 512
    $region25: #{fwd.1} parent=1 // pred_fallthru
      _
    %455 = vsyncpa [#allocation3], 1

</llo_original>
